<compile_context>
chip_gen: v5e
topology: v5e:2x2
jax: 0.10.0
libtpu: 0.0.40
codegen_flags: <defaults>
</compile_context>

<pallas_src>
import jax
import jax.numpy as jnp
from jax.experimental import pallas as pl
from jax.experimental.pallas import tpu as pltpu


def hamiltonian_kernel(state_ref, w1_ref, b1_ref, w2_ref, b2_ref, w3_ref,
                       speed_row_ref, scalars_ref, out_ref):
    # state tile: [TB, 4] f32
    state = state_ref[...]
    w1 = w1_ref[...]                                   # [4, H] f32

    # --- potential_net ------------------------------------------------------
    # Layer 1 (Linear(4, H)): K=4 contraction as 4 rank-1 VPU FMAs.
    pre1 = (state[:, 0:1] * w1[0:1, :]
            + state[:, 1:2] * w1[1:2, :]
            + state[:, 2:3] * w1[2:3, :]
            + state[:, 3:4] * w1[3:4, :]
            + b1_ref[...])                             # [TB, H]
    h1 = jnp.tanh(pre1)

    # Layer 2 (Linear(H, H)): bf16 operands, f32 accumulator on the MXU.
    h2 = jnp.tanh(
        jnp.dot(h1.astype(jnp.bfloat16), w2_ref[...],
                preferred_element_type=jnp.float32)
        + b2_ref[...])                                 # [TB, H]

    # Layer 3 (Linear(H, 1)): elementwise-mul + lane reduction.
    b3 = scalars_ref[0]
    potential = jnp.sum(h2 * w3_ref[...], axis=-1, keepdims=True) + b3   # [TB, 1]

    # --- kinetic energy -----------------------------------------------------
    # 0.5 * mass * speed_weight * speed**2, computed in lane orientation from
    # the full [1, B] speed row (no sublane->lane transpose).
    half_msw = 0.5 * scalars_ref[1] * scalars_ref[2]   # scalar in SMEM
    speed = speed_row_ref[...]                         # [1, B]
    kinetic = half_msw * speed * speed                 # [1, B]

    # PyTorch semantics: potential [B,1] + kinetic [B] broadcasts to [B,B].
    out_ref[...] = potential + kinetic                 # [TB, B]


def hamiltonian_net(state, w1, b1, w2, b2, w3, b3, mass, speed_weight, *, tb=128):
    B = state.shape[0]
    H = w1.shape[1]
    if B % tb != 0:
        tb = B                                          # single-tile fallback
    grid = (B // tb,)

    # Scalar params packed into one SMEM array: [b3, mass, speed_weight].
    scalars = jnp.concatenate(
        [b3.reshape(1), mass.reshape(1), speed_weight.reshape(1)]
    ).astype(jnp.float32)

    # Speeds of ALL states as a lane-oriented [1, B] row (layout plumbing only;
    # the kinetic energy itself is computed inside the kernel).
    speed_row = state[:, 2].reshape(1, B)

    # bf16 weights for the HxH MXU matmul (halves DMA + MXU passes).
    w2_bf16 = w2.astype(jnp.bfloat16)

    const = lambda i: (0, 0)                            # weights stay resident
    return pl.pallas_call(
        hamiltonian_kernel,
        out_shape=jax.ShapeDtypeStruct((B, B), jnp.float32),
        grid=grid,
        in_specs=[
            pl.BlockSpec((tb, 4), lambda i: (i, 0)),    # state tile
            pl.BlockSpec((4, H), const),                # w1   (VMEM-resident)
            pl.BlockSpec((1, H), const),                # b1
            pl.BlockSpec((H, H), const),                # w2 (bf16)
            pl.BlockSpec((1, H), const),                # b2
            pl.BlockSpec((1, H), const),                # w3 (Linear(H,1) weight)
            pl.BlockSpec((1, B), const),                # speed row
            pl.BlockSpec(memory_space=pltpu.MemorySpace.SMEM),  # [b3, mass, sw]
        ],
        out_specs=pl.BlockSpec((tb, B), lambda i: (i, 0)),      # lane-dense
        compiler_params=pltpu.CompilerParams(
            dimension_semantics=("parallel",),          # shards over 2 TCs on v7x
            vmem_limit_bytes=32 * 1024 * 1024,          # fits v7x 64 MiB physical
        ),
    )(state, w1, b1, w2_bf16, b2, w3, speed_row, scalars)


def reference(state, w1, b1, w2, b2, w3, b3, mass, sw):
    h1 = jnp.tanh(state @ w1 + b1)
    h2 = jnp.tanh(h1 @ w2 + b2)
    potential = jnp.sum(h2 * w3, axis=-1, keepdims=True) + b3[0]      # [B, 1]
    kinetic = 0.5 * mass[0] * sw[0] * state[:, 2] ** 2                # [B]
    return potential + kinetic[None, :]                               # [B, B]


if __name__ == "__main__":
    # Small, TPU-tile-aligned shapes: one 128-row batch tile, module-default
    # hidden_dim=256 so the HxH MXU matmul and lane-dense output are exercised.
    B = 128         # batch of states [lon, lat, speed, heading]
    H = 256         # hidden_dim (module default)
    TB = 128        # batch tile (multiple of 8; matches MXU M)

    key = jax.random.PRNGKey(0)
    ks = jax.random.split(key, 7)

    # Deterministic synthetic parameters (shapes match nn.Linear params,
    # stored pre-transposed as [in, out]).
    state = jax.random.normal(ks[0], (B, 4), dtype=jnp.float32)
    w1 = jax.random.normal(ks[1], (4, H), dtype=jnp.float32) * 0.5
    b1 = jax.random.normal(ks[2], (1, H), dtype=jnp.float32) * 0.1
    w2 = jax.random.normal(ks[3], (H, H), dtype=jnp.float32) * (1.0 / jnp.sqrt(H))
    b2 = jax.random.normal(ks[4], (1, H), dtype=jnp.float32) * 0.1
    w3 = jax.random.normal(ks[5], (1, H), dtype=jnp.float32) * (1.0 / jnp.sqrt(H))
    b3 = jax.random.normal(ks[6], (1,), dtype=jnp.float32) * 0.1
    mass = jnp.ones((1,), dtype=jnp.float32)           # nn.Parameter(torch.ones(1))
    speed_weight = jnp.ones((1,), dtype=jnp.float32)   # nn.Parameter(torch.ones(1))

    out = hamiltonian_net(state, w1, b1, w2, b2, w3, b3, mass, speed_weight, tb=TB)
    out = jax.block_until_ready(out)

    ref = reference(state, w1, b1, w2, b2, w3, b3, mass, speed_weight)
    assert out.shape == (B, B), out.shape
    # Tolerance loosened for the bf16 HxH matmul (f32 accumulator).
    max_err = float(jnp.max(jnp.abs(out - ref)))
    assert jnp.allclose(out, ref, atol=5e-2, rtol=5e-2), max_err

    # TODO(synk): save() (filesystem checkpointing) and .to(device) plumbing have
    # no kernel equivalent and are omitted.
    print("KERNEL_OK")
</pallas_src>

<mosaic_0001>
module attributes {stable_mosaic.version = 11 : i64} {
  func.func @hamiltonian_kernel(%arg0: i32, %arg1: memref<128x4xf32, #tpu.memory_space<vmem>>, %arg2: memref<4x256xf32, #tpu.memory_space<vmem>>, %arg3: memref<1x256xf32, #tpu.memory_space<vmem>>, %arg4: memref<256x256xbf16, #tpu.memory_space<vmem>>, %arg5: memref<1x256xf32, #tpu.memory_space<vmem>>, %arg6: memref<1x256xf32, #tpu.memory_space<vmem>>, %arg7: memref<1x128xf32, #tpu.memory_space<vmem>>, %arg8: memref<3xf32, #tpu.memory_space<smem>>, %arg9: memref<128x128xf32, #tpu.memory_space<vmem>>) attributes {dimension_semantics = [#tpu.dimension_semantics<parallel>], iteration_bounds = array<i64: 1>, scalar_prefetch = 0 : i64, scratch_operands = 0 : i64, tpu.core_type = #tpu.core_type<tc>, window_params = [{transform_indices = @transform_0, window_bounds = array<i64: 128, 4>}, {pipeline_mode = #tpu.pipeline_mode<synchronous>, transform_indices = @transform_1, window_bounds = array<i64: 4, 256>}, {pipeline_mode = #tpu.pipeline_mode<synchronous>, transform_indices = @transform_2, window_bounds = array<i64: 1, 256>}, {pipeline_mode = #tpu.pipeline_mode<synchronous>, transform_indices = @transform_3, window_bounds = array<i64: 256, 256>}, {pipeline_mode = #tpu.pipeline_mode<synchronous>, transform_indices = @transform_4, window_bounds = array<i64: 1, 256>}, {pipeline_mode = #tpu.pipeline_mode<synchronous>, transform_indices = @transform_5, window_bounds = array<i64: 1, 256>}, {pipeline_mode = #tpu.pipeline_mode<synchronous>, transform_indices = @transform_6, window_bounds = array<i64: 1, 128>}, {transform_indices = @transform_7, window_bounds = array<i64: 3>}, {transform_indices = @transform_8, window_bounds = array<i64: 128, 128>}]} {
    %c0 = arith.constant 0 : index
    %c0_0 = arith.constant 0 : index
    %0 = vector.load %arg1[%c0, %c0_0] : memref<128x4xf32, #tpu.memory_space<vmem>>, vector<128x4xf32>
    %c0_1 = arith.constant 0 : index
    %c0_2 = arith.constant 0 : index
    %1 = vector.load %arg2[%c0_1, %c0_2] : memref<4x256xf32, #tpu.memory_space<vmem>>, vector<4x256xf32>
    %2 = vector.extract_strided_slice %0 {offsets = [0, 0], sizes = [128, 1], strides = [1, 1]} : vector<128x4xf32> to vector<128x1xf32>
    %3 = vector.extract_strided_slice %1 {offsets = [0, 0], sizes = [1, 256], strides = [1, 1]} : vector<4x256xf32> to vector<1x256xf32>
    %4 = vector.broadcast %2 : vector<128x1xf32> to vector<128x256xf32>
    %5 = vector.broadcast %3 : vector<1x256xf32> to vector<128x256xf32>
    %6 = arith.mulf %4, %5 : vector<128x256xf32>
    %7 = vector.extract_strided_slice %0 {offsets = [0, 1], sizes = [128, 1], strides = [1, 1]} : vector<128x4xf32> to vector<128x1xf32>
    %8 = vector.extract_strided_slice %1 {offsets = [1, 0], sizes = [1, 256], strides = [1, 1]} : vector<4x256xf32> to vector<1x256xf32>
    %9 = vector.broadcast %7 : vector<128x1xf32> to vector<128x256xf32>
    %10 = vector.broadcast %8 : vector<1x256xf32> to vector<128x256xf32>
    %11 = arith.mulf %9, %10 : vector<128x256xf32>
    %12 = arith.addf %6, %11 : vector<128x256xf32>
    %13 = vector.extract_strided_slice %0 {offsets = [0, 2], sizes = [128, 1], strides = [1, 1]} : vector<128x4xf32> to vector<128x1xf32>
    %14 = vector.extract_strided_slice %1 {offsets = [2, 0], sizes = [1, 256], strides = [1, 1]} : vector<4x256xf32> to vector<1x256xf32>
    %15 = vector.broadcast %13 : vector<128x1xf32> to vector<128x256xf32>
    %16 = vector.broadcast %14 : vector<1x256xf32> to vector<128x256xf32>
    %17 = arith.mulf %15, %16 : vector<128x256xf32>
    %18 = arith.addf %12, %17 : vector<128x256xf32>
    %19 = vector.extract_strided_slice %0 {offsets = [0, 3], sizes = [128, 1], strides = [1, 1]} : vector<128x4xf32> to vector<128x1xf32>
    %20 = vector.extract_strided_slice %1 {offsets = [3, 0], sizes = [1, 256], strides = [1, 1]} : vector<4x256xf32> to vector<1x256xf32>
    %21 = vector.broadcast %19 : vector<128x1xf32> to vector<128x256xf32>
    %22 = vector.broadcast %20 : vector<1x256xf32> to vector<128x256xf32>
    %23 = arith.mulf %21, %22 : vector<128x256xf32>
    %24 = arith.addf %18, %23 : vector<128x256xf32>
    %c0_3 = arith.constant 0 : index
    %c0_4 = arith.constant 0 : index
    %25 = vector.load %arg3[%c0_3, %c0_4] : memref<1x256xf32, #tpu.memory_space<vmem>>, vector<1x256xf32>
    %26 = vector.broadcast %25 : vector<1x256xf32> to vector<128x256xf32>
    %27 = arith.addf %24, %26 : vector<128x256xf32>
    %28 = math.tanh %27 : vector<128x256xf32>
    %29 = arith.truncf %28 : vector<128x256xf32> to vector<128x256xbf16>
    %c0_5 = arith.constant 0 : index
    %c0_6 = arith.constant 0 : index
    %30 = vector.load %arg4[%c0_5, %c0_6] : memref<256x256xbf16, #tpu.memory_space<vmem>>, vector<256x256xbf16>
    %cst = arith.constant dense<0.000000e+00> : vector<128x256xf32>
    %31 = tpu.matmul %29, %30, %cst {dimension_numbers = #tpu.dot_dimension_numbers<[1], [0], [0], [1], [0, 0, 1, 1], [], []>} : vector<128x256xbf16>, vector<256x256xbf16>, vector<128x256xf32> -> vector<128x256xf32>
    %c0_7 = arith.constant 0 : index
    %c0_8 = arith.constant 0 : index
    %32 = vector.load %arg5[%c0_7, %c0_8] : memref<1x256xf32, #tpu.memory_space<vmem>>, vector<1x256xf32>
    %33 = vector.broadcast %32 : vector<1x256xf32> to vector<128x256xf32>
    %34 = arith.addf %31, %33 : vector<128x256xf32>
    %35 = math.tanh %34 : vector<128x256xf32>
    %c0_9 = arith.constant 0 : index
    %36 = memref.load %arg8[%c0_9] : memref<3xf32, #tpu.memory_space<smem>>
    %c0_10 = arith.constant 0 : index
    %c0_11 = arith.constant 0 : index
    %37 = vector.load %arg6[%c0_10, %c0_11] : memref<1x256xf32, #tpu.memory_space<vmem>>, vector<1x256xf32>
    %38 = vector.broadcast %37 : vector<1x256xf32> to vector<128x256xf32>
    %39 = arith.mulf %35, %38 : vector<128x256xf32>
    %cst_12 = arith.constant dense<0.000000e+00> : vector<128xf32>
    %40 = vector.multi_reduction <add>, %39, %cst_12 [1] : vector<128x256xf32> to vector<128xf32>
    %41 = vector.shape_cast %40 : vector<128xf32> to vector<128x1xf32>
    %42 = vector.broadcast %36 : f32 to vector<128x1xf32>
    %43 = arith.addf %41, %42 : vector<128x1xf32>
    %c1 = arith.constant 1 : index
    %44 = memref.load %arg8[%c1] : memref<3xf32, #tpu.memory_space<smem>>
    %cst_13 = arith.constant 5.000000e-01 : f32
    %45 = arith.mulf %cst_13, %44 : f32
    %c2 = arith.constant 2 : index
    %46 = memref.load %arg8[%c2] : memref<3xf32, #tpu.memory_space<smem>>
    %47 = arith.mulf %45, %46 : f32
    %c0_14 = arith.constant 0 : index
    %c0_15 = arith.constant 0 : index
    %48 = vector.load %arg7[%c0_14, %c0_15] : memref<1x128xf32, #tpu.memory_space<vmem>>, vector<1x128xf32>
    %49 = vector.broadcast %47 : f32 to vector<1x128xf32>
    %50 = arith.mulf %49, %48 : vector<1x128xf32>
    %51 = arith.mulf %50, %48 : vector<1x128xf32>
    %52 = vector.broadcast %43 : vector<128x1xf32> to vector<128x128xf32>
    %53 = vector.broadcast %51 : vector<1x128xf32> to vector<128x128xf32>
    %54 = arith.addf %52, %53 : vector<128x128xf32>
    %c0_16 = arith.constant 0 : index
    %c0_17 = arith.constant 0 : index
    %55 = vector.load %arg9[%c0_16, %c0_17] : memref<128x128xf32, #tpu.memory_space<vmem>>, vector<128x128xf32>
    tpu.vector_store %arg9[%c0_16, %c0_17], %54 {strides = array<i32>} : memref<128x128xf32, #tpu.memory_space<vmem>>, vector<128x128xf32>,
    return
  }
  func.func @transform_0(%arg0: i32) -> (i32, i32) {
    %c0_i32 = arith.constant 0 : i32
    %c0_i32_0 = arith.constant 0 : i32
    return %arg0, %c0_i32 : i32, i32
  }
  func.func @transform_1(%arg0: i32) -> (i32, i32) {
    %c0_i32 = arith.constant 0 : i32
    %c0_i32_0 = arith.constant 0 : i32
    %c0_i32_1 = arith.constant 0 : i32
    return %c0_i32, %c0_i32_0 : i32, i32
  }
  func.func @transform_2(%arg0: i32) -> (i32, i32) {
    %c0_i32 = arith.constant 0 : i32
    %c0_i32_0 = arith.constant 0 : i32
    %c0_i32_1 = arith.constant 0 : i32
    return %c0_i32, %c0_i32_0 : i32, i32
  }
  func.func @transform_3(%arg0: i32) -> (i32, i32) {
    %c0_i32 = arith.constant 0 : i32
    %c0_i32_0 = arith.constant 0 : i32
    %c0_i32_1 = arith.constant 0 : i32
    return %c0_i32, %c0_i32_0 : i32, i32
  }
  func.func @transform_4(%arg0: i32) -> (i32, i32) {
    %c0_i32 = arith.constant 0 : i32
    %c0_i32_0 = arith.constant 0 : i32
    %c0_i32_1 = arith.constant 0 : i32
    return %c0_i32, %c0_i32_0 : i32, i32
  }
  func.func @transform_5(%arg0: i32) -> (i32, i32) {
    %c0_i32 = arith.constant 0 : i32
    %c0_i32_0 = arith.constant 0 : i32
    %c0_i32_1 = arith.constant 0 : i32
    return %c0_i32, %c0_i32_0 : i32, i32
  }
  func.func @transform_6(%arg0: i32) -> (i32, i32) {
    %c0_i32 = arith.constant 0 : i32
    %c0_i32_0 = arith.constant 0 : i32
    %c0_i32_1 = arith.constant 0 : i32
    return %c0_i32, %c0_i32_0 : i32, i32
  }
  func.func @transform_7(%arg0: i32) -> i32 {
    %c0_i32 = arith.constant 0 : i32
    %c0_i32_0 = arith.constant 0 : i32
    return %c0_i32 : i32
  }
  func.func @transform_8(%arg0: i32) -> (i32, i32) {
    %c0_i32 = arith.constant 0 : i32
    %c0_i32_0 = arith.constant 0 : i32
    return %arg0, %c0_i32 : i32, i32
  }
}

</mosaic_0001>

<llo_original>
// kernel: tpu_custom_call.1
$region0: #{tpu_custom_call.1}
  #allocation0 [shape = 'u32[]', space=smem, size = 0x4, offset = 0x4, fixed_abs, tag = 'smem constant byte address 0x4 - core index']
  #allocation1 [shape = 'u32[72,128]{1,0:T(1,128)}', space=vmem, size = 0x9000, scoped, tag = 'internal scratch']
  %s0 = inlined_call_operand.vmem [shape: f32[128,4], index: 0, kind: input, shape index: {}]
  %s1 = inlined_call_operand.vmem [shape: f32[4,256], index: 1, kind: input, shape index: {}]
  %s2 = inlined_call_operand.vmem [shape: f32[1,256], index: 2, kind: input, shape index: {}]
  %s3 = inlined_call_operand.hbm [shape: bf16[256,256], index: 3, kind: input, shape index: {}]
  %s4 = inlined_call_operand.vmem [shape: f32[1,256], index: 4, kind: input, shape index: {}]
  %s5 = inlined_call_operand.vmem [shape: f32[1,256], index: 5, kind: input, shape index: {}]
  %s6 = inlined_call_operand.vmem [shape: f32[1,128], index: 6, kind: input, shape index: {}]
  %s7 = inlined_call_operand.vmem [shape: f32[3], index: 7, kind: input, shape index: {}]
  %s8 = inlined_call_operand.hbm [shape: f32[128,128], index: 8, kind: output, shape index: {}]
  %s9 = sld [smem:[#allocation0]]
  $region50: #{tpu_custom_call.1} parent=0
    _
  %s11 = ssub.s32 1, %s9
  %s12 = scalar_select 0, %s11, %s9
  $region1: #{tpu_custom_call.1} parent=0
    #allocation2 [shape = 'u8[131072]{0}', space=vmem, size = 0x20000, scoped, tag = 'input window, operand 3, single buffered']
    #allocation3 [shape = 's32[1]{0}', space=sflag, size = 0x4, scoped, tag = 'scoped memory for tpu_custom_call.1']
    #allocation4 [shape = 's32[1]{0}', space=sflag, size = 0x4, scoped, tag = 'scoped memory for tpu_custom_call.1']
    #allocation5 [shape = 's32[1]{0}', space=sflag, size = 0x4, scoped, tag = 'scoped memory for tpu_custom_call.1']
    #allocation6 [shape = 'u8[512]{0}', space=smem, size = 0x200, scoped, tag = 'input window, operand 7, single buffered']
    #allocation7 [shape = 'u8[65536]{0}', space=vmem, size = 0x10000, scoped, tag = 'output window, operand 0, single buffered']
    %13 = vsyncpa [#allocation3], 0
    %14 = vsyncpa [#allocation5], 0
    %15 = vsyncpa [#allocation4], 0
    // Predicated region
    $region2: #{tpu_custom_call.1} parent=1 // pred_check
      _
    $region3: #{tpu_custom_call.1} parent=1 // pred_check_branch
      %17 = sbr.rel (0) target = $region5
    $region4: #{tpu_custom_call.1} parent=1 // pred_region
      _
    $region5: #{tpu_custom_call.1} parent=1 // pred_fallthru
      _
    // Predicated region
    $region6: #{tpu_custom_call.1} parent=1 // pred_check
      _
    $region7: #{tpu_custom_call.1} parent=1 // pred_check_branch
      %19 = sbr.rel (0) target = $region9
    $region8: #{tpu_custom_call.1} parent=1 // pred_region
      _
    $region9: #{tpu_custom_call.1} parent=1 // pred_fallthru
      _
    // Predicated region
    $region10: #{tpu_custom_call.1} parent=1 // pred_check
      _
    $region11: #{tpu_custom_call.1} parent=1 // pred_check_branch
      %21 = sbr.rel (0) target = $region13
    $region12: #{tpu_custom_call.1} parent=1 // pred_region
      _
    $region13: #{tpu_custom_call.1} parent=1 // pred_fallthru
      _
    // Predicated region
    $region14: #{tpu_custom_call.1} parent=1 // pred_check
      _
    $region15: #{tpu_custom_call.1} parent=1 // pred_check_branch
      %23 = sbr.rel (0) target = $region17
    $region16: #{tpu_custom_call.1} parent=1 // pred_region
      %25 = vsyncadd [#allocation3], 0
      %s26 = sshll.u32 %s3, 4
      %s27 = int_to_ptr.hbm [resolvable:$true] %s26
      %s28 = sshll.u32 [#allocation2], 4
      %s29 = int_to_ptr.vmem [resolvable:$true] %s28
      %34 = dma.hbm_to_vmem [thread:$0]  %s27, 4096, %s29, [#allocation3], 128, 128, 8
    $region17: #{tpu_custom_call.1} parent=1 // pred_fallthru
      _
    // Predicated region
    $region18: #{tpu_custom_call.1} parent=1 // pred_check
      _
    $region19: #{tpu_custom_call.1} parent=1 // pred_check_branch
      %36 = sbr.rel (0) target = $region21
    $region20: #{tpu_custom_call.1} parent=1 // pred_region
      _
    $region21: #{tpu_custom_call.1} parent=1 // pred_fallthru
      _
    // Predicated region
    $region22: #{tpu_custom_call.1} parent=1 // pred_check
      _
    $region23: #{tpu_custom_call.1} parent=1 // pred_check_branch
      %38 = sbr.rel (0) target = $region25
    $region24: #{tpu_custom_call.1} parent=1 // pred_region
      _
    $region25: #{tpu_custom_call.1} parent=1 // pred_fallthru
      _
    // Predicated region
    $region26: #{tpu_custom_call.1} parent=1 // pred_check
      _
    $region27: #{tpu_custom_call.1} parent=1 // pred_check_branch
      %40 = sbr.rel (0) target = $region29
    $region28: #{tpu_custom_call.1} parent=1 // pred_region
      _
    $region29: #{tpu_custom_call.1} parent=1 // pred_fallthru
      _
    // Predicated region
    $region30: #{tpu_custom_call.1} parent=1 // pred_check
      _
    $region31: #{tpu_custom_call.1} parent=1 // pred_check_branch
      %42 = sbr.rel (0) target = $region33
    $region32: #{tpu_custom_call.1} parent=1 // pred_region
      %44 = vsyncadd [#allocation5], 0
      %s46 = sshll.u32 %s7, 4
      %s47 = int_to_ptr.vmem [resolvable:$true] %s46
      %49 = dma.vmem_to_smem %s47, 16, [#allocation6], [#allocation5]
    $region33: #{tpu_custom_call.1} parent=1 // pred_fallthru
      _
    // Predicated region
    $region34: #{tpu_custom_call.1} parent=1 // pred_check
      _
    $region35: #{tpu_custom_call.1} parent=1 // pred_check_branch
      %51 = sbr.rel (0) target = $region37
    $region36: #{tpu_custom_call.1} parent=1 // pred_region
      %53 = dma.done [#allocation3], 4096
    $region37: #{tpu_custom_call.1} parent=1 // pred_fallthru
      _
    // Predicated region
    $region38: #{tpu_custom_call.1} parent=1 // pred_check
      _
    $region39: #{tpu_custom_call.1} parent=1 // pred_check_branch
      %55 = sbr.rel (0) target = $region41
    $region40: #{tpu_custom_call.1} parent=1 // pred_region
      %57 = dma.done [#allocation5], 16
    $region41: #{tpu_custom_call.1} parent=1 // pred_fallthru
      _
    %58 = sfence
    %v59 = vld [vmem:[%s0] sm:$0xff]
    %v60 = vld [vmem:[%s0 + $0x8] sm:$0xff]
    %v61 = vld [vmem:[%s0 + $0x10] sm:$0xff]
    %v62 = vld [vmem:[%s0 + $0x18] sm:$0xff]
    %v63 = vld [vmem:[%s0 + $0x20] sm:$0xff]
    %v64 = vld [vmem:[%s0 + $0x28] sm:$0xff]
    %v65 = vld [vmem:[%s0 + $0x30] sm:$0xff]
    %v66 = vld [vmem:[%s0 + $0x38] sm:$0xff]
    %v67 = vld [vmem:[%s0 + $0x40] sm:$0xff]
    %v68 = vld [vmem:[%s0 + $0x48] sm:$0xff]
    %v69 = vld [vmem:[%s0 + $0x50] sm:$0xff]
    %v70 = vld [vmem:[%s0 + $0x58] sm:$0xff]
    %v71 = vld [vmem:[%s0 + $0x60] sm:$0xff]
    %v72 = vld [vmem:[%s0 + $0x68] sm:$0xff]
    %v73 = vld [vmem:[%s0 + $0x70] sm:$0xff]
    %v74 = vld [vmem:[%s0 + $0x78] sm:$0xff]
    %v75 = vld [vmem:[%s1] sm:$0xff]
    %77 = vset.pattern.permute.xlu0 0
    %78 = vperm.xlu0 %77, %v59
    %v79 = vpop.permute.xlu0 %78
    %82 = vset.pattern.permute.xlu0 0
    %83 = vperm.xlu0 %82, %v60
    %v84 = vpop.permute.xlu0 %83
    %87 = vset.pattern.permute.xlu0 0
    %88 = vperm.xlu0 %87, %v61
    %v89 = vpop.permute.xlu0 %88
    %92 = vset.pattern.permute.xlu0 0
    %93 = vperm.xlu0 %92, %v62
    %v94 = vpop.permute.xlu0 %93
    %97 = vset.pattern.permute.xlu0 0
    %98 = vperm.xlu0 %97, %v63
    %v99 = vpop.permute.xlu0 %98
    %102 = vset.pattern.permute.xlu0 0
    %103 = vperm.xlu0 %102, %v64
    %v104 = vpop.permute.xlu0 %103
    %107 = vset.pattern.permute.xlu0 0
    %108 = vperm.xlu0 %107, %v65
    %v109 = vpop.permute.xlu0 %108
    %112 = vset.pattern.permute.xlu0 0
    %113 = vperm.xlu0 %112, %v66
    %v114 = vpop.permute.xlu0 %113
    %117 = vset.pattern.permute.xlu0 0
    %118 = vperm.xlu0 %117, %v67
    %v119 = vpop.permute.xlu0 %118
    %122 = vset.pattern.permute.xlu0 0
    %123 = vperm.xlu0 %122, %v68
    %v124 = vpop.permute.xlu0 %123
    %127 = vset.pattern.permute.xlu0 0
    %128 = vperm.xlu0 %127, %v69
    %v129 = vpop.permute.xlu0 %128
    %132 = vset.pattern.permute.xlu0 0
    %133 = vperm.xlu0 %132, %v70
    %v134 = vpop.permute.xlu0 %133
    %137 = vset.pattern.permute.xlu0 0
    %138 = vperm.xlu0 %137, %v71
    %v139 = vpop.permute.xlu0 %138
    %142 = vset.pattern.permute.xlu0 0
    %143 = vperm.xlu0 %142, %v72
    %v144 = vpop.permute.xlu0 %143
    %147 = vset.pattern.permute.xlu0 0
    %148 = vperm.xlu0 %147, %v73
    %v149 = vpop.permute.xlu0 %148
    %152 = vset.pattern.permute.xlu0 0
    %153 = vperm.xlu0 %152, %v74
    %v154 = vpop.permute.xlu0 %153
    %v157 = vperm.slane %v75, 0
    %v158 = vperm.slane %v75, 4
    %v161 = vperm.slane %v157, 0
    %v162 = vperm.slane %v158, 0
    %v163 = vmul.f32 %v79, %v161
    %v164 = vmul.f32 %v79, %v162
    %v165 = vmul.f32 %v84, %v161
    %v166 = vmul.f32 %v84, %v162
    %v167 = vmul.f32 %v89, %v161
    %v168 = vmul.f32 %v89, %v162
    %v169 = vmul.f32 %v94, %v161
    %v170 = vmul.f32 %v94, %v162
    %v171 = vmul.f32 %v99, %v161
    %v172 = vmul.f32 %v99, %v162
    %v173 = vmul.f32 %v104, %v161
    %v174 = vmul.f32 %v104, %v162
    %v175 = vmul.f32 %v109, %v161
    %v176 = vmul.f32 %v109, %v162
    %v177 = vmul.f32 %v114, %v161
    %v178 = vmul.f32 %v114, %v162
    %v179 = vmul.f32 %v119, %v161
    %v180 = vmul.f32 %v119, %v162
    %v181 = vmul.f32 %v124, %v161
    %v182 = vmul.f32 %v124, %v162
    %v183 = vmul.f32 %v129, %v161
    %v184 = vmul.f32 %v129, %v162
    %v185 = vmul.f32 %v134, %v161
    %v186 = vmul.f32 %v134, %v162
    %v187 = vmul.f32 %v139, %v161
    %v188 = vmul.f32 %v139, %v162
    %v189 = vmul.f32 %v144, %v161
    %v190 = vmul.f32 %v144, %v162
    %v191 = vmul.f32 %v149, %v161
    %v192 = vmul.f32 %v149, %v162
    %v193 = vmul.f32 %v154, %v161
    %v194 = vmul.f32 %v154, %v162
    %195 = vset.pattern.permute.xlu0 1
    %196 = vperm.xlu0 %195, %v59
    %v197 = vpop.permute.xlu0 %196
    %199 = vset.pattern.permute.xlu0 1
    %200 = vperm.xlu0 %199, %v60
    %v201 = vpop.permute.xlu0 %200
    %203 = vset.pattern.permute.xlu0 1
    %204 = vperm.xlu0 %203, %v61
    %v205 = vpop.permute.xlu0 %204
    %207 = vset.pattern.permute.xlu0 1
    %208 = vperm.xlu0 %207, %v62
    %v209 = vpop.permute.xlu0 %208
    %211 = vset.pattern.permute.xlu0 1
    %212 = vperm.xlu0 %211, %v63
    %v213 = vpop.permute.xlu0 %212
    %215 = vset.pattern.permute.xlu0 1
    %216 = vperm.xlu0 %215, %v64
    %v217 = vpop.permute.xlu0 %216
    %219 = vset.pattern.permute.xlu0 1
    %220 = vperm.xlu0 %219, %v65
    %v221 = vpop.permute.xlu0 %220
    %223 = vset.pattern.permute.xlu0 1
    %224 = vperm.xlu0 %223, %v66
    %v225 = vpop.permute.xlu0 %224
    %227 = vset.pattern.permute.xlu0 1
    %228 = vperm.xlu0 %227, %v67
    %v229 = vpop.permute.xlu0 %228
    %231 = vset.pattern.permute.xlu0 1
    %232 = vperm.xlu0 %231, %v68
    %v233 = vpop.permute.xlu0 %232
    %235 = vset.pattern.permute.xlu0 1
    %236 = vperm.xlu0 %235, %v69
    %v237 = vpop.permute.xlu0 %236
    %239 = vset.pattern.permute.xlu0 1
    %240 = vperm.xlu0 %239, %v70
    %v241 = vpop.permute.xlu0 %240
    %243 = vset.pattern.permute.xlu0 1
    %244 = vperm.xlu0 %243, %v71
    %v245 = vpop.permute.xlu0 %244
    %247 = vset.pattern.permute.xlu0 1
    %248 = vperm.xlu0 %247, %v72
    %v249 = vpop.permute.xlu0 %248
    %251 = vset.pattern.permute.xlu0 1
    %252 = vperm.xlu0 %251, %v73
    %v253 = vpop.permute.xlu0 %252
    %255 = vset.pattern.permute.xlu0 1
    %256 = vperm.xlu0 %255, %v74
    %v257 = vpop.permute.xlu0 %256
    %v259 = vperm.slane %v75, 1
    %v260 = vperm.slane %v75, 5
    %v263 = vperm.slane %v259, 1
    %v264 = vperm.slane %v260, 1
    %v265 = vmul.f32 %v197, %v263
    %v266 = vmul.f32 %v197, %v264
    %v267 = vmul.f32 %v201, %v263
    %v268 = vmul.f32 %v201, %v264
    %v269 = vmul.f32 %v205, %v263
    %v270 = vmul.f32 %v205, %v264
    %v271 = vmul.f32 %v209, %v263
    %v272 = vmul.f32 %v209, %v264
    %v273 = vmul.f32 %v213, %v263
    %v274 = vmul.f32 %v213, %v264
    %v275 = vmul.f32 %v217, %v263
    %v276 = vmul.f32 %v217, %v264
    %v277 = vmul.f32 %v221, %v263
    %v278 = vmul.f32 %v221, %v264
    %v279 = vmul.f32 %v225, %v263
    %v280 = vmul.f32 %v225, %v264
    %v281 = vmul.f32 %v229, %v263
    %v282 = vmul.f32 %v229, %v264
    %v283 = vmul.f32 %v233, %v263
    %v284 = vmul.f32 %v233, %v264
    %v285 = vmul.f32 %v237, %v263
    %v286 = vmul.f32 %v237, %v264
    %v287 = vmul.f32 %v241, %v263
    %v288 = vmul.f32 %v241, %v264
    %v289 = vmul.f32 %v245, %v263
    %v290 = vmul.f32 %v245, %v264
    %v291 = vmul.f32 %v249, %v263
    %v292 = vmul.f32 %v249, %v264
    %v293 = vmul.f32 %v253, %v263
    %v294 = vmul.f32 %v253, %v264
    %v295 = vmul.f32 %v257, %v263
    %v296 = vmul.f32 %v257, %v264
    %v297 = vadd.f32 %v163, %v265
    %v298 = vadd.f32 %v164, %v266
    %v299 = vadd.f32 %v165, %v267
    %v300 = vadd.f32 %v166, %v268
    %v301 = vadd.f32 %v167, %v269
    %v302 = vadd.f32 %v168, %v270
    %v303 = vadd.f32 %v169, %v271
    %v304 = vadd.f32 %v170, %v272
    %v305 = vadd.f32 %v171, %v273
    %v306 = vadd.f32 %v172, %v274
    %v307 = vadd.f32 %v173, %v275
    %v308 = vadd.f32 %v174, %v276
    %v309 = vadd.f32 %v175, %v277
    %v310 = vadd.f32 %v176, %v278
    %v311 = vadd.f32 %v177, %v279
    %v312 = vadd.f32 %v178, %v280
    %v313 = vadd.f32 %v179, %v281
    %v314 = vadd.f32 %v180, %v282
    %v315 = vadd.f32 %v181, %v283
    %v316 = vadd.f32 %v182, %v284
    %v317 = vadd.f32 %v183, %v285
    %v318 = vadd.f32 %v184, %v286
    %v319 = vadd.f32 %v185, %v287
    %v320 = vadd.f32 %v186, %v288
    %v321 = vadd.f32 %v187, %v289
    %v322 = vadd.f32 %v188, %v290
    %v323 = vadd.f32 %v189, %v291
    %v324 = vadd.f32 %v190, %v292
    %v325 = vadd.f32 %v191, %v293
    %v326 = vadd.f32 %v192, %v294
    %v327 = vadd.f32 %v193, %v295
    %v328 = vadd.f32 %v194, %v296
    %329 = vset.pattern.permute.xlu0 2
    %330 = vperm.xlu0 %329, %v59
    %v331 = vpop.permute.xlu0 %330
    %333 = vset.pattern.permute.xlu0 2
    %334 = vperm.xlu0 %333, %v60
    %v335 = vpop.permute.xlu0 %334
    %337 = vset.pattern.permute.xlu0 2
    %338 = vperm.xlu0 %337, %v61
    %v339 = vpop.permute.xlu0 %338
    %341 = vset.pattern.permute.xlu0 2
    %342 = vperm.xlu0 %341, %v62
    %v343 = vpop.permute.xlu0 %342
    %345 = vset.pattern.permute.xlu0 2
    %346 = vperm.xlu0 %345, %v63
    %v347 = vpop.permute.xlu0 %346
    %349 = vset.pattern.permute.xlu0 2
    %350 = vperm.xlu0 %349, %v64
    %v351 = vpop.permute.xlu0 %350
    %353 = vset.pattern.permute.xlu0 2
    %354 = vperm.xlu0 %353, %v65
    %v355 = vpop.permute.xlu0 %354
    %357 = vset.pattern.permute.xlu0 2
    %358 = vperm.xlu0 %357, %v66
    %v359 = vpop.permute.xlu0 %358
    %361 = vset.pattern.permute.xlu0 2
    %362 = vperm.xlu0 %361, %v67
    %v363 = vpop.permute.xlu0 %362
    %365 = vset.pattern.permute.xlu0 2
    %366 = vperm.xlu0 %365, %v68
    %v367 = vpop.permute.xlu0 %366
    %369 = vset.pattern.permute.xlu0 2
    %370 = vperm.xlu0 %369, %v69
    %v371 = vpop.permute.xlu0 %370
    %373 = vset.pattern.permute.xlu0 2
    %374 = vperm.xlu0 %373, %v70
    %v375 = vpop.permute.xlu0 %374
    %377 = vset.pattern.permute.xlu0 2
    %378 = vperm.xlu0 %377, %v71
    %v379 = vpop.permute.xlu0 %378
    %381 = vset.pattern.permute.xlu0 2
    %382 = vperm.xlu0 %381, %v72
    %v383 = vpop.permute.xlu0 %382
    %385 = vset.pattern.permute.xlu0 2
    %386 = vperm.xlu0 %385, %v73
    %v387 = vpop.permute.xlu0 %386
    %389 = vset.pattern.permute.xlu0 2
    %390 = vperm.xlu0 %389, %v74
    %v391 = vpop.permute.xlu0 %390
    %v393 = vperm.slane %v75, 2
    %v394 = vperm.slane %v75, 6
    %v397 = vperm.slane %v393, 2
    %v398 = vperm.slane %v394, 2
    %v399 = vmul.f32 %v331, %v397
    %v400 = vmul.f32 %v331, %v398
    %v401 = vmul.f32 %v335, %v397
    %v402 = vmul.f32 %v335, %v398
    %v403 = vmul.f32 %v339, %v397
    %v404 = vmul.f32 %v339, %v398
    %v405 = vmul.f32 %v343, %v397
    %v406 = vmul.f32 %v343, %v398
    %v407 = vmul.f32 %v347, %v397
    %v408 = vmul.f32 %v347, %v398
    %v409 = vmul.f32 %v351, %v397
    %v410 = vmul.f32 %v351, %v398
    %v411 = vmul.f32 %v355, %v397
    %v412 = vmul.f32 %v355, %v398
    %v413 = vmul.f32 %v359, %v397
    %v414 = vmul.f32 %v359, %v398
    %v415 = vmul.f32 %v363, %v397
    %v416 = vmul.f32 %v363, %v398
    %v417 = vmul.f32 %v367, %v397
    %v418 = vmul.f32 %v367, %v398
    %v419 = vmul.f32 %v371, %v397
    %v420 = vmul.f32 %v371, %v398
    %v421 = vmul.f32 %v375, %v397
    %v422 = vmul.f32 %v375, %v398
    %v423 = vmul.f32 %v379, %v397
    %v424 = vmul.f32 %v379, %v398
    %v425 = vmul.f32 %v383, %v397
    %v426 = vmul.f32 %v383, %v398
    %v427 = vmul.f32 %v387, %v397
    %v428 = vmul.f32 %v387, %v398
    %v429 = vmul.f32 %v391, %v397
    %v430 = vmul.f32 %v391, %v398
    %v431 = vadd.f32 %v297, %v399
    %v432 = vadd.f32 %v298, %v400
    %v433 = vadd.f32 %v299, %v401
    %v434 = vadd.f32 %v300, %v402
    %v435 = vadd.f32 %v301, %v403
    %v436 = vadd.f32 %v302, %v404
    %v437 = vadd.f32 %v303, %v405
    %v438 = vadd.f32 %v304, %v406
    %v439 = vadd.f32 %v305, %v407
    %v440 = vadd.f32 %v306, %v408
    %v441 = vadd.f32 %v307, %v409
    %v442 = vadd.f32 %v308, %v410
    %v443 = vadd.f32 %v309, %v411
    %v444 = vadd.f32 %v310, %v412
    %v445 = vadd.f32 %v311, %v413
    %v446 = vadd.f32 %v312, %v414
    %v447 = vadd.f32 %v313, %v415
    %v448 = vadd.f32 %v314, %v416
    %v449 = vadd.f32 %v315, %v417
    %v450 = vadd.f32 %v316, %v418
    %v451 = vadd.f32 %v317, %v419
    %v452 = vadd.f32 %v318, %v420
    %v453 = vadd.f32 %v319, %v421
    %v454 = vadd.f32 %v320, %v422
    %v455 = vadd.f32 %v321, %v423
    %v456 = vadd.f32 %v322, %v424
    %v457 = vadd.f32 %v323, %v425
    %v458 = vadd.f32 %v324, %v426
    %v459 = vadd.f32 %v325, %v427
    %v460 = vadd.f32 %v326, %v428
    %v461 = vadd.f32 %v327, %v429
    %v462 = vadd.f32 %v328, %v430
    %463 = vset.pattern.permute.xlu0 3
    %464 = vperm.xlu0 %463, %v59
    %v465 = vpop.permute.xlu0 %464
    %467 = vset.pattern.permute.xlu0 3
    %468 = vperm.xlu0 %467, %v60
    %v469 = vpop.permute.xlu0 %468
    %471 = vset.pattern.permute.xlu0 3
    %472 = vperm.xlu0 %471, %v61
    %v473 = vpop.permute.xlu0 %472
    %475 = vset.pattern.permute.xlu0 3
    %476 = vperm.xlu0 %475, %v62
    %v477 = vpop.permute.xlu0 %476
    %479 = vset.pattern.permute.xlu0 3
    %480 = vperm.xlu0 %479, %v63
    %v481 = vpop.permute.xlu0 %480
    %483 = vset.pattern.permute.xlu0 3
    %484 = vperm.xlu0 %483, %v64
    %v485 = vpop.permute.xlu0 %484
    %487 = vset.pattern.permute.xlu0 3
    %488 = vperm.xlu0 %487, %v65
    %v489 = vpop.permute.xlu0 %488
    %491 = vset.pattern.permute.xlu0 3
    %492 = vperm.xlu0 %491, %v66
    %v493 = vpop.permute.xlu0 %492
    %495 = vset.pattern.permute.xlu0 3
    %496 = vperm.xlu0 %495, %v67
    %v497 = vpop.permute.xlu0 %496
    %499 = vset.pattern.permute.xlu0 3
    %500 = vperm.xlu0 %499, %v68
    %v501 = vpop.permute.xlu0 %500
    %503 = vset.pattern.permute.xlu0 3
    %504 = vperm.xlu0 %503, %v69
    %v505 = vpop.permute.xlu0 %504
    %507 = vset.pattern.permute.xlu0 3
    %508 = vperm.xlu0 %507, %v70
    %v509 = vpop.permute.xlu0 %508
    %511 = vset.pattern.permute.xlu0 3
    %512 = vperm.xlu0 %511, %v71
    %v513 = vpop.permute.xlu0 %512
    %515 = vset.pattern.permute.xlu0 3
    %516 = vperm.xlu0 %515, %v72
    %v517 = vpop.permute.xlu0 %516
    %519 = vset.pattern.permute.xlu0 3
    %520 = vperm.xlu0 %519, %v73
    %v521 = vpop.permute.xlu0 %520
    %523 = vset.pattern.permute.xlu0 3
    %524 = vperm.xlu0 %523, %v74
    %v525 = vpop.permute.xlu0 %524
    %v527 = vperm.slane %v75, 3
    %v528 = vperm.slane %v75, 7
    %v531 = vperm.slane %v527, 3
    %v532 = vperm.slane %v528, 3
    %v533 = vmul.f32 %v465, %v531
    %v534 = vmul.f32 %v465, %v532
    %v535 = vmul.f32 %v469, %v531
    %v536 = vmul.f32 %v469, %v532
    %v537 = vmul.f32 %v473, %v531
    %v538 = vmul.f32 %v473, %v532
    %v539 = vmul.f32 %v477, %v531
    %v540 = vmul.f32 %v477, %v532
    %v541 = vmul.f32 %v481, %v531
    %v542 = vmul.f32 %v481, %v532
    %v543 = vmul.f32 %v485, %v531
    %v544 = vmul.f32 %v485, %v532
    %v545 = vmul.f32 %v489, %v531
    %v546 = vmul.f32 %v489, %v532
    %v547 = vmul.f32 %v493, %v531
    %v548 = vmul.f32 %v493, %v532
    %v549 = vmul.f32 %v497, %v531
    %v550 = vmul.f32 %v497, %v532
    %v551 = vmul.f32 %v501, %v531
    %v552 = vmul.f32 %v501, %v532
    %v553 = vmul.f32 %v505, %v531
    %v554 = vmul.f32 %v505, %v532
    %v555 = vmul.f32 %v509, %v531
    %v556 = vmul.f32 %v509, %v532
    %v557 = vmul.f32 %v513, %v531
    %v558 = vmul.f32 %v513, %v532
    %v559 = vmul.f32 %v517, %v531
    %v560 = vmul.f32 %v517, %v532
    %v561 = vmul.f32 %v521, %v531
    %v562 = vmul.f32 %v521, %v532
    %v563 = vmul.f32 %v525, %v531
    %v564 = vmul.f32 %v525, %v532
    %v565 = vadd.f32 %v431, %v533
    %v566 = vadd.f32 %v432, %v534
    %v567 = vadd.f32 %v433, %v535
    %v568 = vadd.f32 %v434, %v536
    %v569 = vadd.f32 %v435, %v537
    %v570 = vadd.f32 %v436, %v538
    %v571 = vadd.f32 %v437, %v539
    %v572 = vadd.f32 %v438, %v540
    %v573 = vadd.f32 %v439, %v541
    %v574 = vadd.f32 %v440, %v542
    %v575 = vadd.f32 %v441, %v543
    %v576 = vadd.f32 %v442, %v544
    %v577 = vadd.f32 %v443, %v545
    %v578 = vadd.f32 %v444, %v546
    %v579 = vadd.f32 %v445, %v547
    %v580 = vadd.f32 %v446, %v548
    %v581 = vadd.f32 %v447, %v549
    %v582 = vadd.f32 %v448, %v550
    %v583 = vadd.f32 %v449, %v551
    %v584 = vadd.f32 %v450, %v552
    %v585 = vadd.f32 %v451, %v553
    %v586 = vadd.f32 %v452, %v554
    %v587 = vadd.f32 %v453, %v555
    %v588 = vadd.f32 %v454, %v556
    %v589 = vadd.f32 %v455, %v557
    %v590 = vadd.f32 %v456, %v558
    %v591 = vadd.f32 %v457, %v559
    %v592 = vadd.f32 %v458, %v560
    %v593 = vadd.f32 %v459, %v561
    %v594 = vadd.f32 %v460, %v562
    %v595 = vadd.f32 %v461, %v563
    %v596 = vadd.f32 %v462, %v564
    %v597 = vld [vmem:[%s2] sm:$0x3]
    %v599 = vperm.slane %v597, 0
    %v600 = vperm.slane %v597, 1
    %v603 = vadd.f32 %v565, %v599
    %v604 = vadd.f32 %v566, %v600
    %v605 = vadd.f32 %v567, %v599
    %v606 = vadd.f32 %v568, %v600
    %v607 = vadd.f32 %v569, %v599
    %v608 = vadd.f32 %v570, %v600
    %v609 = vadd.f32 %v571, %v599
    %v610 = vadd.f32 %v572, %v600
    %v611 = vadd.f32 %v573, %v599
    %v612 = vadd.f32 %v574, %v600
    %v613 = vadd.f32 %v575, %v599
    %v614 = vadd.f32 %v576, %v600
    %v615 = vadd.f32 %v577, %v599
    %v616 = vadd.f32 %v578, %v600
    %v617 = vadd.f32 %v579, %v599
    %v618 = vadd.f32 %v580, %v600
    %v619 = vadd.f32 %v581, %v599
    %v620 = vadd.f32 %v582, %v600
    %v621 = vadd.f32 %v583, %v599
    %v622 = vadd.f32 %v584, %v600
    %v623 = vadd.f32 %v585, %v599
    %v624 = vadd.f32 %v586, %v600
    %v625 = vadd.f32 %v587, %v599
    %v626 = vadd.f32 %v588, %v600
    %v627 = vadd.f32 %v589, %v599
    %v628 = vadd.f32 %v590, %v600
    %v629 = vadd.f32 %v591, %v599
    %v630 = vadd.f32 %v592, %v600
    %v631 = vadd.f32 %v593, %v599
    %v632 = vadd.f32 %v594, %v600
    %v633 = vadd.f32 %v595, %v599
    %v634 = vadd.f32 %v596, %v600
    %v635 = vtanh.pop %v603
    %v636 = vtanh.pop %v604
    %v637 = vtanh.pop %v605
    %v638 = vtanh.pop %v606
    %v639 = vtanh.pop %v607
    %v640 = vtanh.pop %v608
    %v641 = vtanh.pop %v609
    %v642 = vtanh.pop %v610
    %v643 = vtanh.pop %v611
    %v644 = vtanh.pop %v612
    %v645 = vtanh.pop %v613
    %v646 = vtanh.pop %v614
    %v647 = vtanh.pop %v615
    %v648 = vtanh.pop %v616
    %v649 = vtanh.pop %v617
    %v650 = vtanh.pop %v618
    %v651 = vtanh.pop %v619
    %v652 = vtanh.pop %v620
    %v653 = vtanh.pop %v621
    %v654 = vtanh.pop %v622
    %v655 = vtanh.pop %v623
    %v656 = vtanh.pop %v624
    %v657 = vtanh.pop %v625
    %v658 = vtanh.pop %v626
    %v659 = vtanh.pop %v627
    %v660 = vtanh.pop %v628
    %v661 = vtanh.pop %v629
    %v662 = vtanh.pop %v630
    %v663 = vtanh.pop %v631
    %v664 = vtanh.pop %v632
    %v665 = vtanh.pop %v633
    %v666 = vtanh.pop %v634
    %v667 = vpack.c.bf16 %v637, %v635
    %v668 = vpack.c.bf16 %v638, %v636
    %v669 = vpack.c.bf16 %v641, %v639
    %v670 = vpack.c.bf16 %v642, %v640
    %v671 = vpack.c.bf16 %v645, %v643
    %v672 = vpack.c.bf16 %v646, %v644
    %v673 = vpack.c.bf16 %v649, %v647
    %v674 = vpack.c.bf16 %v650, %v648
    %v675 = vpack.c.bf16 %v653, %v651
    %v676 = vpack.c.bf16 %v654, %v652
    %v677 = vpack.c.bf16 %v657, %v655
    %v678 = vpack.c.bf16 %v658, %v656
    %v679 = vpack.c.bf16 %v661, %v659
    %v680 = vpack.c.bf16 %v662, %v660
    %v681 = vpack.c.bf16 %v665, %v663
    %v682 = vpack.c.bf16 %v666, %v664
    %v683 = vld [vmem:[#allocation2] sm:$0xff]
    %v684 = vld [vmem:[#allocation2 + $0x8] sm:$0xff]
    %v685 = vld [vmem:[#allocation2 + $0x10] sm:$0xff]
    %v686 = vld [vmem:[#allocation2 + $0x18] sm:$0xff]
    %v687 = vld [vmem:[#allocation2 + $0x20] sm:$0xff]
    %v688 = vld [vmem:[#allocation2 + $0x28] sm:$0xff]
    %v689 = vld [vmem:[#allocation2 + $0x30] sm:$0xff]
    %v690 = vld [vmem:[#allocation2 + $0x38] sm:$0xff]
    %v691 = vld [vmem:[#allocation2 + $0x40] sm:$0xff]
    %v692 = vld [vmem:[#allocation2 + $0x48] sm:$0xff]
    %v693 = vld [vmem:[#allocation2 + $0x50] sm:$0xff]
    %v694 = vld [vmem:[#allocation2 + $0x58] sm:$0xff]
    %v695 = vld [vmem:[#allocation2 + $0x60] sm:$0xff]
    %v696 = vld [vmem:[#allocation2 + $0x68] sm:$0xff]
    %v697 = vld [vmem:[#allocation2 + $0x70] sm:$0xff]
    %v698 = vld [vmem:[#allocation2 + $0x78] sm:$0xff]
    %v699 = vld [vmem:[#allocation2 + $0x80] sm:$0xff]
    %v700 = vld [vmem:[#allocation2 + $0x88] sm:$0xff]
    %v701 = vld [vmem:[#allocation2 + $0x90] sm:$0xff]
    %v702 = vld [vmem:[#allocation2 + $0x98] sm:$0xff]
    %v703 = vld [vmem:[#allocation2 + $0xa0] sm:$0xff]
    %v704 = vld [vmem:[#allocation2 + $0xa8] sm:$0xff]
    %v705 = vld [vmem:[#allocation2 + $0xb0] sm:$0xff]
    %v706 = vld [vmem:[#allocation2 + $0xb8] sm:$0xff]
    %v707 = vld [vmem:[#allocation2 + $0xc0] sm:$0xff]
    %v708 = vld [vmem:[#allocation2 + $0xc8] sm:$0xff]
    %v709 = vld [vmem:[#allocation2 + $0xd0] sm:$0xff]
    %v710 = vld [vmem:[#allocation2 + $0xd8] sm:$0xff]
    %v711 = vld [vmem:[#allocation2 + $0xe0] sm:$0xff]
    %v712 = vld [vmem:[#allocation2 + $0xe8] sm:$0xff]
    %v713 = vld [vmem:[#allocation2 + $0xf0] sm:$0xff]
    %v714 = vld [vmem:[#allocation2 + $0xf8] sm:$0xff]
    %v715 = vld [vmem:[%s4] sm:$0x3]
    %v717 = vperm.slane %v715, 0
    %v718 = vperm.slane %v715, 1
    %v753 = vunpack.c.l.b16 %v683
    %v754 = vunpack.c.h.b16 %v683
    %v755 = vunpack.c.l.b16 %v684
    %v756 = vunpack.c.h.b16 %v684
    %v757 = vunpack.c.l.b16 %v685
    %v758 = vunpack.c.h.b16 %v685
    %v759 = vunpack.c.l.b16 %v686
    %v760 = vunpack.c.h.b16 %v686
    %v761 = vunpack.c.l.b16 %v687
    %v762 = vunpack.c.h.b16 %v687
    %v763 = vunpack.c.l.b16 %v688
    %v764 = vunpack.c.h.b16 %v688
    %v765 = vunpack.c.l.b16 %v689
    %v766 = vunpack.c.h.b16 %v689
    %v767 = vunpack.c.l.b16 %v690
    %v768 = vunpack.c.h.b16 %v690
    %v769 = vunpack.c.l.b16 %v691
    %v770 = vunpack.c.h.b16 %v691
    %v771 = vunpack.c.l.b16 %v692
    %v772 = vunpack.c.h.b16 %v692
    %v773 = vunpack.c.l.b16 %v693
    %v774 = vunpack.c.h.b16 %v693
    %v775 = vunpack.c.l.b16 %v694
    %v776 = vunpack.c.h.b16 %v694
    %v777 = vunpack.c.l.b16 %v695
    %v778 = vunpack.c.h.b16 %v695
    %v779 = vunpack.c.l.b16 %v696
    %v780 = vunpack.c.h.b16 %v696
    %v781 = vunpack.c.l.b16 %v697
    %v782 = vunpack.c.h.b16 %v697
    %v783 = vunpack.c.l.b16 %v698
    %v784 = vunpack.c.h.b16 %v698
    %v785 = vunpack.c.l.b16 %v699
    %v786 = vunpack.c.h.b16 %v699
    %v787 = vunpack.c.l.b16 %v700
    %v788 = vunpack.c.h.b16 %v700
    %v789 = vunpack.c.l.b16 %v701
    %v790 = vunpack.c.h.b16 %v701
    %v791 = vunpack.c.l.b16 %v702
    %v792 = vunpack.c.h.b16 %v702
    %v793 = vunpack.c.l.b16 %v703
    %v794 = vunpack.c.h.b16 %v703
    %v795 = vunpack.c.l.b16 %v704
    %v796 = vunpack.c.h.b16 %v704
    %v797 = vunpack.c.l.b16 %v705
    %v798 = vunpack.c.h.b16 %v705
    %v799 = vunpack.c.l.b16 %v706
    %v800 = vunpack.c.h.b16 %v706
    %v801 = vunpack.c.l.b16 %v707
    %v802 = vunpack.c.h.b16 %v707
    %v803 = vunpack.c.l.b16 %v708
    %v804 = vunpack.c.h.b16 %v708
    %v805 = vunpack.c.l.b16 %v709
    %v806 = vunpack.c.h.b16 %v709
    %v807 = vunpack.c.l.b16 %v710
    %v808 = vunpack.c.h.b16 %v710
    %v809 = vunpack.c.l.b16 %v711
    %v810 = vunpack.c.h.b16 %v711
    %v811 = vunpack.c.l.b16 %v712
    %v812 = vunpack.c.h.b16 %v712
    %v813 = vunpack.c.l.b16 %v713
    %v814 = vunpack.c.h.b16 %v713
    %v815 = vunpack.c.l.b16 %v714
    %v816 = vunpack.c.h.b16 %v714
    %v817 = vpack.c.b16 %v755, %v753
    %v818 = vpack.c.b16 %v756, %v754
    %v819 = vpack.c.b16 %v759, %v757
    %v820 = vpack.c.b16 %v760, %v758
    %v821 = vpack.c.b16 %v763, %v761
    %v822 = vpack.c.b16 %v764, %v762
    %v823 = vpack.c.b16 %v767, %v765
    %v824 = vpack.c.b16 %v768, %v766
    %v825 = vpack.c.b16 %v771, %v769
    %v826 = vpack.c.b16 %v772, %v770
    %v827 = vpack.c.b16 %v775, %v773
    %v828 = vpack.c.b16 %v776, %v774
    %v829 = vpack.c.b16 %v779, %v777
    %v830 = vpack.c.b16 %v780, %v778
    %v831 = vpack.c.b16 %v783, %v781
    %v832 = vpack.c.b16 %v784, %v782
    %v833 = vpack.c.b16 %v787, %v785
    %v834 = vpack.c.b16 %v788, %v786
    %v835 = vpack.c.b16 %v791, %v789
    %v836 = vpack.c.b16 %v792, %v790
    %v837 = vpack.c.b16 %v795, %v793
    %v838 = vpack.c.b16 %v796, %v794
    %v839 = vpack.c.b16 %v799, %v797
    %v840 = vpack.c.b16 %v800, %v798
    %v841 = vpack.c.b16 %v803, %v801
    %v842 = vpack.c.b16 %v804, %v802
    %v843 = vpack.c.b16 %v807, %v805
    %v844 = vpack.c.b16 %v808, %v806
    %v845 = vpack.c.b16 %v811, %v809
    %v846 = vpack.c.b16 %v812, %v810
    %v847 = vpack.c.b16 %v815, %v813
    %v848 = vpack.c.b16 %v816, %v814
    %881 = vmatpush.bf16.msra.mxu0 %v831
    %882 = vmatpush.bf16.msra.mxu0 %v829
    %883 = vmatpush.bf16.msra.mxu0 %v827
    %884 = vmatpush.bf16.msra.mxu0 %v825
    %885 = vmatpush.bf16.msra.mxu0 %v823
    %886 = vmatpush.bf16.msra.mxu0 %v821
    %887 = vmatpush.bf16.msra.mxu0 %v819
    %888 = vmatpush.bf16.msra.mxu0 %v817
    %889 = vmatmul.bf16.gmra.mxu0 %v667
    %v890 = vpop.f32.mrf.mxu0
    %v891 = vadd.f32 %v717, %v890
    %v892 = vpop.f32.mrf.mxu0
    %v893 = vadd.f32 %v717, %v892
    %894 = vmatmul.bf16.gmra.mxu0 %v669
    %v895 = vpop.f32.mrf.mxu0
    %v896 = vadd.f32 %v717, %v895
    %v897 = vpop.f32.mrf.mxu0
    %v898 = vadd.f32 %v717, %v897
    %899 = vmatmul.bf16.gmra.mxu0 %v671
    %v900 = vpop.f32.mrf.mxu0
    %v901 = vadd.f32 %v717, %v900
    %v902 = vpop.f32.mrf.mxu0
    %v903 = vadd.f32 %v717, %v902
    %904 = vmatmul.bf16.gmra.mxu0 %v673
    %v905 = vpop.f32.mrf.mxu0
    %v906 = vadd.f32 %v717, %v905
    %v907 = vpop.f32.mrf.mxu0
    %v908 = vadd.f32 %v717, %v907
    %909 = vmatmul.bf16.gmra.mxu0 %v675
    %v910 = vpop.f32.mrf.mxu0
    %v911 = vadd.f32 %v717, %v910
    %v912 = vpop.f32.mrf.mxu0
    %v913 = vadd.f32 %v717, %v912
    %914 = vmatmul.bf16.gmra.mxu0 %v677
    %v915 = vpop.f32.mrf.mxu0
    %v916 = vadd.f32 %v717, %v915
    %v917 = vpop.f32.mrf.mxu0
    %v918 = vadd.f32 %v717, %v917
    %919 = vmatmul.bf16.gmra.mxu0 %v679
    %v920 = vpop.f32.mrf.mxu0
    %v921 = vadd.f32 %v717, %v920
    %v922 = vpop.f32.mrf.mxu0
    %v923 = vadd.f32 %v717, %v922
    %924 = vmatmul.bf16.gmra.mxu0 %v681
    %v925 = vpop.f32.mrf.mxu0
    %v926 = vadd.f32 %v717, %v925
    %v927 = vpop.f32.mrf.mxu0
    %v928 = vadd.f32 %v717, %v927
    %929 = vdwg.mxu0
    %930 = vmatpush.bf16.msra.mxu0 %v847
    %931 = vmatpush.bf16.msra.mxu0 %v845
    %932 = vmatpush.bf16.msra.mxu0 %v843
    %933 = vmatpush.bf16.msra.mxu0 %v841
    %934 = vmatpush.bf16.msra.mxu0 %v839
    %935 = vmatpush.bf16.msra.mxu0 %v837
    %936 = vmatpush.bf16.msra.mxu0 %v835
    %937 = vmatpush.bf16.msra.mxu0 %v833
    %938 = vmatmul.bf16.gmra.mxu0 %v668
    %v939 = vpop.f32.mrf.mxu0
    %v940 = vadd.f32 %v891, %v939
    %v941 = vpop.f32.mrf.mxu0
    %v942 = vadd.f32 %v893, %v941
    %943 = vmatmul.bf16.gmra.mxu0 %v670
    %v944 = vpop.f32.mrf.mxu0
    %v945 = vadd.f32 %v896, %v944
    %v946 = vpop.f32.mrf.mxu0
    %v947 = vadd.f32 %v898, %v946
    %948 = vmatmul.bf16.gmra.mxu0 %v672
    %v949 = vpop.f32.mrf.mxu0
    %v950 = vadd.f32 %v901, %v949
    %v951 = vpop.f32.mrf.mxu0
    %v952 = vadd.f32 %v903, %v951
    %953 = vmatmul.bf16.gmra.mxu0 %v674
    %v954 = vpop.f32.mrf.mxu0
    %v955 = vadd.f32 %v906, %v954
    %v956 = vpop.f32.mrf.mxu0
    %v957 = vadd.f32 %v908, %v956
    %958 = vmatmul.bf16.gmra.mxu0 %v676
    %v959 = vpop.f32.mrf.mxu0
    %v960 = vadd.f32 %v911, %v959
    %v961 = vpop.f32.mrf.mxu0
    %v962 = vadd.f32 %v913, %v961
    %963 = vmatmul.bf16.gmra.mxu0 %v678
    %v964 = vpop.f32.mrf.mxu0
    %v965 = vadd.f32 %v916, %v964
    %v966 = vpop.f32.mrf.mxu0
    %v967 = vadd.f32 %v918, %v966
    %968 = vmatmul.bf16.gmra.mxu0 %v680
    %v969 = vpop.f32.mrf.mxu0
    %v970 = vadd.f32 %v921, %v969
    %v971 = vpop.f32.mrf.mxu0
    %v972 = vadd.f32 %v923, %v971
    %973 = vmatmul.bf16.gmra.mxu0 %v682
    %v974 = vpop.f32.mrf.mxu0
    %v975 = vadd.f32 %v926, %v974
    %v976 = vpop.f32.mrf.mxu0
    %v977 = vadd.f32 %v928, %v976
    %978 = vdwg.mxu0
    %979 = vmatpush.bf16.msra.mxu0 %v832
    %980 = vmatpush.bf16.msra.mxu0 %v830
    %981 = vmatpush.bf16.msra.mxu0 %v828
    %982 = vmatpush.bf16.msra.mxu0 %v826
    %983 = vmatpush.bf16.msra.mxu0 %v824
    %984 = vmatpush.bf16.msra.mxu0 %v822
    %985 = vmatpush.bf16.msra.mxu0 %v820
    %986 = vmatpush.bf16.msra.mxu0 %v818
    %987 = vmatmul.bf16.gmra.mxu0 %v667
    %v988 = vpop.f32.mrf.mxu0
    %v989 = vadd.f32 %v718, %v988
    %v990 = vpop.f32.mrf.mxu0
    %v991 = vadd.f32 %v718, %v990
    %992 = vmatmul.bf16.gmra.mxu0 %v669
    %v993 = vpop.f32.mrf.mxu0
    %v994 = vadd.f32 %v718, %v993
    %v995 = vpop.f32.mrf.mxu0
    %v996 = vadd.f32 %v718, %v995
    %997 = vmatmul.bf16.gmra.mxu0 %v671
    %v998 = vpop.f32.mrf.mxu0
    %v999 = vadd.f32 %v718, %v998
    %v1000 = vpop.f32.mrf.mxu0
    %v1001 = vadd.f32 %v718, %v1000
    %1002 = vmatmul.bf16.gmra.mxu0 %v673
    %v1003 = vpop.f32.mrf.mxu0
    %v1004 = vadd.f32 %v718, %v1003
    %v1005 = vpop.f32.mrf.mxu0
    %v1006 = vadd.f32 %v718, %v1005
    %1007 = vmatmul.bf16.gmra.mxu0 %v675
    %v1008 = vpop.f32.mrf.mxu0
    %v1009 = vadd.f32 %v718, %v1008
    %v1010 = vpop.f32.mrf.mxu0
    %v1011 = vadd.f32 %v718, %v1010
    %1012 = vmatmul.bf16.gmra.mxu0 %v677
    %v1013 = vpop.f32.mrf.mxu0
    %v1014 = vadd.f32 %v718, %v1013
    %v1015 = vpop.f32.mrf.mxu0
    %v1016 = vadd.f32 %v718, %v1015
    %1017 = vmatmul.bf16.gmra.mxu0 %v679
    %v1018 = vpop.f32.mrf.mxu0
    %v1019 = vadd.f32 %v718, %v1018
    %v1020 = vpop.f32.mrf.mxu0
    %v1021 = vadd.f32 %v718, %v1020
    %1022 = vmatmul.bf16.gmra.mxu0 %v681
    %v1023 = vpop.f32.mrf.mxu0
    %v1024 = vadd.f32 %v718, %v1023
    %v1025 = vpop.f32.mrf.mxu0
    %v1026 = vadd.f32 %v718, %v1025
    %1027 = vdwg.mxu0
    %1028 = vmatpush.bf16.msra.mxu0 %v848
    %1029 = vmatpush.bf16.msra.mxu0 %v846
    %1030 = vmatpush.bf16.msra.mxu0 %v844
    %1031 = vmatpush.bf16.msra.mxu0 %v842
    %1032 = vmatpush.bf16.msra.mxu0 %v840
    %1033 = vmatpush.bf16.msra.mxu0 %v838
    %1034 = vmatpush.bf16.msra.mxu0 %v836
    %1035 = vmatpush.bf16.msra.mxu0 %v834
    %1036 = vmatmul.bf16.gmra.mxu0 %v668
    %v1037 = vpop.f32.mrf.mxu0
    %v1038 = vadd.f32 %v989, %v1037
    %v1039 = vpop.f32.mrf.mxu0
    %v1040 = vadd.f32 %v991, %v1039
    %1041 = vmatmul.bf16.gmra.mxu0 %v670
    %v1042 = vpop.f32.mrf.mxu0
    %v1043 = vadd.f32 %v994, %v1042
    %v1044 = vpop.f32.mrf.mxu0
    %v1045 = vadd.f32 %v996, %v1044
    %1046 = vmatmul.bf16.gmra.mxu0 %v672
    %v1047 = vpop.f32.mrf.mxu0
    %v1048 = vadd.f32 %v999, %v1047
    %v1049 = vpop.f32.mrf.mxu0
    %v1050 = vadd.f32 %v1001, %v1049
    %1051 = vmatmul.bf16.gmra.mxu0 %v674
    %v1052 = vpop.f32.mrf.mxu0
    %v1053 = vadd.f32 %v1004, %v1052
    %v1054 = vpop.f32.mrf.mxu0
    %v1055 = vadd.f32 %v1006, %v1054
    %1056 = vmatmul.bf16.gmra.mxu0 %v676
    %v1057 = vpop.f32.mrf.mxu0
    %v1058 = vadd.f32 %v1009, %v1057
    %v1059 = vpop.f32.mrf.mxu0
    %v1060 = vadd.f32 %v1011, %v1059
    %1061 = vmatmul.bf16.gmra.mxu0 %v678
    %v1062 = vpop.f32.mrf.mxu0
    %v1063 = vadd.f32 %v1014, %v1062
    %v1064 = vpop.f32.mrf.mxu0
    %v1065 = vadd.f32 %v1016, %v1064
    %1066 = vmatmul.bf16.gmra.mxu0 %v680
    %v1067 = vpop.f32.mrf.mxu0
    %v1068 = vadd.f32 %v1019, %v1067
    %v1069 = vpop.f32.mrf.mxu0
    %v1070 = vadd.f32 %v1021, %v1069
    %1071 = vmatmul.bf16.gmra.mxu0 %v682
    %v1072 = vpop.f32.mrf.mxu0
    %v1073 = vadd.f32 %v1024, %v1072
    %v1074 = vpop.f32.mrf.mxu0
    %v1075 = vadd.f32 %v1026, %v1074
    %1076 = vdwg.mxu0
    %v1077 = vtanh.pop %v940
    %v1078 = vtanh.pop %v1038
    %v1079 = vtanh.pop %v942
    %v1080 = vtanh.pop %v1040
    %v1081 = vtanh.pop %v945
    %v1082 = vtanh.pop %v1043
    %v1083 = vtanh.pop %v947
    %v1084 = vtanh.pop %v1045
    %v1085 = vtanh.pop %v950
    %v1086 = vtanh.pop %v1048
    %v1087 = vtanh.pop %v952
    %v1088 = vtanh.pop %v1050
    %v1089 = vtanh.pop %v955
    %v1090 = vtanh.pop %v1053
    %v1091 = vtanh.pop %v957
    %v1092 = vtanh.pop %v1055
    %v1093 = vtanh.pop %v960
    %v1094 = vtanh.pop %v1058
    %v1095 = vtanh.pop %v962
    %v1096 = vtanh.pop %v1060
    %v1097 = vtanh.pop %v965
    %v1098 = vtanh.pop %v1063
    %v1099 = vtanh.pop %v967
    %v1100 = vtanh.pop %v1065
    %v1101 = vtanh.pop %v970
    %v1102 = vtanh.pop %v1068
    %v1103 = vtanh.pop %v972
    %v1104 = vtanh.pop %v1070
    %v1105 = vtanh.pop %v975
    %v1106 = vtanh.pop %v1073
    %v1107 = vtanh.pop %v977
    %v1108 = vtanh.pop %v1075
    %s1109 = sld [smem:[#allocation6]]
    %v1110 = vld [vmem:[%s5] sm:$0x3]
    %v1112 = vperm.slane %v1110, 0
    %v1113 = vperm.slane %v1110, 1
    %v1116 = vmul.f32 %v1077, %v1112
    %v1117 = vmul.f32 %v1078, %v1113
    %v1118 = vmul.f32 %v1079, %v1112
    %v1119 = vmul.f32 %v1080, %v1113
    %v1120 = vmul.f32 %v1081, %v1112
    %v1121 = vmul.f32 %v1082, %v1113
    %v1122 = vmul.f32 %v1083, %v1112
    %v1123 = vmul.f32 %v1084, %v1113
    %v1124 = vmul.f32 %v1085, %v1112
    %v1125 = vmul.f32 %v1086, %v1113
    %v1126 = vmul.f32 %v1087, %v1112
    %v1127 = vmul.f32 %v1088, %v1113
    %v1128 = vmul.f32 %v1089, %v1112
    %v1129 = vmul.f32 %v1090, %v1113
    %v1130 = vmul.f32 %v1091, %v1112
    %v1131 = vmul.f32 %v1092, %v1113
    %v1132 = vmul.f32 %v1093, %v1112
    %v1133 = vmul.f32 %v1094, %v1113
    %v1134 = vmul.f32 %v1095, %v1112
    %v1135 = vmul.f32 %v1096, %v1113
    %v1136 = vmul.f32 %v1097, %v1112
    %v1137 = vmul.f32 %v1098, %v1113
    %v1138 = vmul.f32 %v1099, %v1112
    %v1139 = vmul.f32 %v1100, %v1113
    %v1140 = vmul.f32 %v1101, %v1112
    %v1141 = vmul.f32 %v1102, %v1113
    %v1142 = vmul.f32 %v1103, %v1112
    %v1143 = vmul.f32 %v1104, %v1113
    %v1144 = vmul.f32 %v1105, %v1112
    %v1145 = vmul.f32 %v1106, %v1113
    %v1146 = vmul.f32 %v1107, %v1112
    %v1147 = vmul.f32 %v1108, %v1113
    %v1148 = vadd.f32 %v1116, %v1117
    %1149 = vadd.xlane.f32.xlu0 %v1148
    %v1150 = vpop.xlane.xlu0 %1149
    %v1151 = vadd.f32 %v1118, %v1119
    %1152 = vadd.xlane.f32.xlu0 %v1151
    %v1153 = vpop.xlane.xlu0 %1152
    %v1154 = vadd.f32 %v1120, %v1121
    %1155 = vadd.xlane.f32.xlu0 %v1154
    %v1156 = vpop.xlane.xlu0 %1155
    %v1157 = vadd.f32 %v1122, %v1123
    %1158 = vadd.xlane.f32.xlu0 %v1157
    %v1159 = vpop.xlane.xlu0 %1158
    %v1160 = vadd.f32 %v1124, %v1125
    %1161 = vadd.xlane.f32.xlu0 %v1160
    %v1162 = vpop.xlane.xlu0 %1161
    %v1163 = vadd.f32 %v1126, %v1127
    %1164 = vadd.xlane.f32.xlu0 %v1163
    %v1165 = vpop.xlane.xlu0 %1164
    %v1166 = vadd.f32 %v1128, %v1129
    %1167 = vadd.xlane.f32.xlu0 %v1166
    %v1168 = vpop.xlane.xlu0 %1167
    %v1169 = vadd.f32 %v1130, %v1131
    %1170 = vadd.xlane.f32.xlu0 %v1169
    %v1171 = vpop.xlane.xlu0 %1170
    %v1172 = vadd.f32 %v1132, %v1133
    %1173 = vadd.xlane.f32.xlu0 %v1172
    %v1174 = vpop.xlane.xlu0 %1173
    %v1175 = vadd.f32 %v1134, %v1135
    %1176 = vadd.xlane.f32.xlu0 %v1175
    %v1177 = vpop.xlane.xlu0 %1176
    %v1178 = vadd.f32 %v1136, %v1137
    %1179 = vadd.xlane.f32.xlu0 %v1178
    %v1180 = vpop.xlane.xlu0 %1179
    %v1181 = vadd.f32 %v1138, %v1139
    %1182 = vadd.xlane.f32.xlu0 %v1181
    %v1183 = vpop.xlane.xlu0 %1182
    %v1184 = vadd.f32 %v1140, %v1141
    %1185 = vadd.xlane.f32.xlu0 %v1184
    %v1186 = vpop.xlane.xlu0 %1185
    %v1187 = vadd.f32 %v1142, %v1143
    %1188 = vadd.xlane.f32.xlu0 %v1187
    %v1189 = vpop.xlane.xlu0 %1188
    %v1190 = vadd.f32 %v1144, %v1145
    %1191 = vadd.xlane.f32.xlu0 %v1190
    %v1192 = vpop.xlane.xlu0 %1191
    %v1193 = vadd.f32 %v1146, %v1147
    %1194 = vadd.xlane.f32.xlu0 %v1193
    %v1195 = vpop.xlane.xlu0 %1194
    %v1196 = vstv %s1109
    %v1197 = vadd.f32 %v1150, %v1196
    %v1198 = vadd.f32 %v1153, %v1196
    %v1199 = vadd.f32 %v1156, %v1196
    %v1200 = vadd.f32 %v1159, %v1196
    %v1201 = vadd.f32 %v1162, %v1196
    %v1202 = vadd.f32 %v1165, %v1196
    %v1203 = vadd.f32 %v1168, %v1196
    %v1204 = vadd.f32 %v1171, %v1196
    %v1205 = vadd.f32 %v1174, %v1196
    %v1206 = vadd.f32 %v1177, %v1196
    %v1207 = vadd.f32 %v1180, %v1196
    %v1208 = vadd.f32 %v1183, %v1196
    %v1209 = vadd.f32 %v1186, %v1196
    %v1210 = vadd.f32 %v1189, %v1196
    %v1211 = vadd.f32 %v1192, %v1196
    %v1212 = vadd.f32 %v1195, %v1196
    %s1213 = sld [smem:[#allocation6 + $0x1]]
    %s1214 = smul.f32 %s1213, 0.5
    %s1215 = sld [smem:[#allocation6 + $0x2]]
    %s1216 = smul.f32 %s1214, %s1215
    %v1217 = vld [vmem:[%s6] sm:$0x1]
    %v1218 = vstv %s1216
    %v1219 = vmul.f32 %v1218, %v1217
    %v1220 = vmul.f32 %v1219, %v1217
    %v1222 = vperm.slane %v1220, 0
    %v1224 = vadd.f32 %v1197, %v1222
    %v1225 = vadd.f32 %v1198, %v1222
    %v1226 = vadd.f32 %v1199, %v1222
    %v1227 = vadd.f32 %v1200, %v1222
    %v1228 = vadd.f32 %v1201, %v1222
    %v1229 = vadd.f32 %v1202, %v1222
    %v1230 = vadd.f32 %v1203, %v1222
    %v1231 = vadd.f32 %v1204, %v1222
    %v1232 = vadd.f32 %v1205, %v1222
    %v1233 = vadd.f32 %v1206, %v1222
    %v1234 = vadd.f32 %v1207, %v1222
    %v1235 = vadd.f32 %v1208, %v1222
    %v1236 = vadd.f32 %v1209, %v1222
    %v1237 = vadd.f32 %v1210, %v1222
    %v1238 = vadd.f32 %v1211, %v1222
    %v1239 = vadd.f32 %v1212, %v1222
    %1240 = vst [vmem:[#allocation7] sm:$0xff] %v1224
    %1241 = vst [vmem:[#allocation7 + $0x8] sm:$0xff] %v1225
    %1242 = vst [vmem:[#allocation7 + $0x10] sm:$0xff] %v1226
    %1243 = vst [vmem:[#allocation7 + $0x18] sm:$0xff] %v1227
    %1244 = vst [vmem:[#allocation7 + $0x20] sm:$0xff] %v1228
    %1245 = vst [vmem:[#allocation7 + $0x28] sm:$0xff] %v1229
    %1246 = vst [vmem:[#allocation7 + $0x30] sm:$0xff] %v1230
    %1247 = vst [vmem:[#allocation7 + $0x38] sm:$0xff] %v1231
    %1248 = vst [vmem:[#allocation7 + $0x40] sm:$0xff] %v1232
    %1249 = vst [vmem:[#allocation7 + $0x48] sm:$0xff] %v1233
    %1250 = vst [vmem:[#allocation7 + $0x50] sm:$0xff] %v1234
    %1251 = vst [vmem:[#allocation7 + $0x58] sm:$0xff] %v1235
    %1252 = vst [vmem:[#allocation7 + $0x60] sm:$0xff] %v1236
    %1253 = vst [vmem:[#allocation7 + $0x68] sm:$0xff] %v1237
    %1254 = vst [vmem:[#allocation7 + $0x70] sm:$0xff] %v1238
    %1255 = vst [vmem:[#allocation7 + $0x78] sm:$0xff] %v1239
    // Predicated region
    $region42: #{tpu_custom_call.1} parent=1 // pred_check
      _
    $region43: #{tpu_custom_call.1} parent=1 // pred_check_branch
      %1257 = sbr.rel (0) target = $region45
    $region44: #{tpu_custom_call.1} parent=1 // pred_region
      %1259 = vsyncadd [#allocation4], 0
      %s1260 = sshll.u32 [#allocation7], 4
      %s1261 = int_to_ptr.vmem [resolvable:$true] %s1260
      %s1262 = sshll.u32 %s8, 4
      %s1263 = int_to_ptr.hbm [resolvable:$true] %s1262
      %1268 = dma.vmem_to_hbm [thread:$0]  %s1261, 2048, %s1263, [#allocation4], 128, 128, 8
    $region45: #{tpu_custom_call.1} parent=1 // pred_fallthru
      _
    // Predicated region
    $region46: #{tpu_custom_call.1} parent=1 // pred_check
      _
    $region47: #{tpu_custom_call.1} parent=1 // pred_check_branch
      %1270 = sbr.rel (0) target = $region49
    $region48: #{tpu_custom_call.1} parent=1 // pred_region
      %1272 = dma.done [#allocation4], 2048
    $region49: #{tpu_custom_call.1} parent=1 // pred_fallthru
      _
    %1273 = vsyncpa [#allocation3], 1
    %1274 = vsyncpa [#allocation4], 1
    %1275 = vsyncpa [#allocation5], 1

</llo_original>
